<compile_context>
chip_gen: v6e
topology: v6e:2x2x1
jax: 0.10.0
libtpu: 0.0.40
codegen_flags: <defaults>
</compile_context>

<pallas_src>
import functools

import jax
import jax.numpy as jnp
from jax import lax
from jax.experimental import pallas as pl
from jax.experimental.pallas import tpu as pltpu


# ---------------------------------------------------------------------------
# Tiled linear (x @ W + b) kernel — output-stationary, K innermost.
# ---------------------------------------------------------------------------
def _linear_kernel(x_ref, w_ref, b_ref, o_ref, acc_ref):
    k = pl.program_id(2)

    @pl.when(k == 0)
    def _init():
        # Fold the bias into the accumulator init instead of adding at finalize.
        acc_ref[...] = jnp.broadcast_to(
            b_ref[...].astype(jnp.float32), acc_ref.shape
        )

    acc_ref[...] += jnp.dot(
        x_ref[...], w_ref[...], preferred_element_type=jnp.float32
    )

    @pl.when(k == pl.num_programs(2) - 1)
    def _finalize():
        o_ref[...] = acc_ref[...].astype(o_ref.dtype)


def _round_up(x: int, m: int) -> int:
    return (x + m - 1) // m * m


def _choose_tile(dim: int, pref: int, align: int) -> int:
    """Tile size: `pref` for large dims, else the whole (alignment-padded) dim."""
    padded = _round_up(dim, align)
    return pref if padded >= pref else padded


def _linear_pallas(x2d, w, b, *, compute_dtype=jnp.bfloat16):
    """x2d: (M, K), w: (K, N) pre-transposed weight, b: (1, N).  Returns (M, N)."""
    M, K = x2d.shape
    K2, N = w.shape
    assert K == K2, "weight inner dim must match activation hidden dim"

    # Tile prefs chosen to be safe across v5e/v6e/v7x VMEM budgets (≈2 MiB total
    # with double buffering); collapse to the full padded dim for small shapes.
    tm = _choose_tile(M, 256, 8)
    tn = _choose_tile(N, 256, 128)
    tk = _choose_tile(K, 512, 128)

    Mp, Kp, Np = _round_up(M, tm), _round_up(K, tk), _round_up(N, tn)

    xp = x2d if (Mp, Kp) == (M, K) else jnp.pad(x2d, ((0, Mp - M), (0, Kp - K)))
    wp = w if (Kp, Np) == (K, N) else jnp.pad(w, ((0, Kp - K), (0, Np - N)))
    bp = b if Np == N else jnp.pad(b, ((0, 0), (0, Np - N)))

    # bf16 MXU inputs; f32 accumulator lives in the kernel; bias kept f32.
    xp = xp.astype(compute_dtype)
    wp = wp.astype(compute_dtype)
    bp = bp.astype(jnp.float32)

    out_dtype = x2d.dtype
    grid = (Mp // tm, Np // tn, Kp // tk)

    cost = pl.CostEstimate(
        flops=2 * Mp * Kp * Np,
        transcendentals=0,
        bytes_accessed=(
            xp.size * xp.dtype.itemsize
            + wp.size * wp.dtype.itemsize
            + bp.size * bp.dtype.itemsize
            + Mp * Np * jnp.dtype(out_dtype).itemsize
        ),
    )

    out = pl.pallas_call(
        _linear_kernel,
        out_shape=jax.ShapeDtypeStruct((Mp, Np), out_dtype),
        grid_spec=pltpu.PrefetchScalarGridSpec(
            num_scalar_prefetch=0,
            grid=grid,
            in_specs=[
                pl.BlockSpec((tm, tk), lambda i, j, k: (i, k)),  # x
                pl.BlockSpec((tk, tn), lambda i, j, k: (k, j)),  # w
                pl.BlockSpec((1, tn), lambda i, j, k: (0, j)),   # b
            ],
            out_specs=pl.BlockSpec((tm, tn), lambda i, j, k: (i, j)),
            scratch_shapes=[pltpu.VMEM((tm, tn), jnp.float32)],
        ),
        compiler_params=pltpu.CompilerParams(
            dimension_semantics=("parallel", "parallel", "arbitrary"),
        ),
        cost_estimate=cost,
    )(xp, wp, bp)

    if (Mp, Np) != (M, N):
        out = out[:M, :N]
    return out


# ---------------------------------------------------------------------------
# StochasticSkipBlock forward
# ---------------------------------------------------------------------------
@functools.partial(jax.jit, static_argnames=("p", "training"))
def stochastic_skip_block(x, w, b, key, *, p: float = 0.5, training: bool = True):
    """
    x:   (..., H_in) activations
    w:   (H_in, H_out) weight, pre-transposed so the kernel computes x @ w
    b:   (1, H_out) bias
    key: jax PRNG key for the Bernoulli skip decision (caller advances it per
         step — replaces torch's global RNG state).
    """
    H_in, H_out = w.shape
    orig_shape = x.shape
    x2d = x.reshape(-1, H_in)

    def run_sb1(op):
        return _linear_pallas(op, w, b)

    if training:
        if H_in != H_out:
            raise ValueError(
                "StochasticSkipBlock requires a shape-preserving sb1 "
                f"(H_in={H_in} != H_out={H_out}) so the skip branch matches."
            )
        # torch.rand(1).item() < p  ->  scalar Bernoulli skip decision, drawn
        # outside the kernel so the skip branch does zero compute / no W DMA.
        skip = jax.random.uniform(key, (), dtype=jnp.float32) < jnp.float32(p)
        out2d = lax.cond(skip, lambda op: op, run_sb1, x2d)
    else:
        out2d = run_sb1(x2d)

    return out2d.reshape(orig_shape[:-1] + (H_out,))


# TODO(synk): no custom VJP is defined; training-mode backprop through the
# non-skip branch needs a backward kernel (pallas_call has no default autodiff).


if __name__ == "__main__":
    key = jax.random.PRNGKey(0)
    k_x, k_w, k_b, k_skip_a, k_skip_b = jax.random.split(key, 5)

    B, S, H = 2, 8, 32
    p = 0.5

    x = jax.random.normal(k_x, (B, S, H), dtype=jnp.float32)
    # Deterministic "Linear(H, H)" parameters (synthetic init, no checkpoint).
    w = jax.random.normal(k_w, (H, H), dtype=jnp.float32) * 0.05   # (H_in, H_out)
    b = jax.random.normal(k_b, (1, H), dtype=jnp.float32) * 0.05

    # Reference uses the same bf16-input / f32-accumulate recipe as the kernel.
    ref_linear = (
        jnp.dot(
            x.reshape(B * S, H).astype(jnp.bfloat16),
            w.astype(jnp.bfloat16),
            preferred_element_type=jnp.float32,
        )
        + b
    ).reshape(B, S, H)

    # Eval mode: must always equal sb1(x).
    out_eval = stochastic_skip_block(x, w, b, k_skip_a, p=p, training=False)
    jax.block_until_ready(out_eval)
    assert out_eval.shape == (B, S, H)
    assert jnp.allclose(out_eval, ref_linear, atol=1e-2, rtol=1e-2), "eval path mismatch"

    # Training mode: output must be exactly x (skip) or sb1(x) (no skip).
    for k_skip in (k_skip_a, k_skip_b):
        out_train = stochastic_skip_block(x, w, b, k_skip, p=p, training=True)
        jax.block_until_ready(out_train)
        is_skip = bool(jnp.allclose(out_train, x, atol=1e-6))
        is_sb1 = bool(jnp.allclose(out_train, ref_linear, atol=1e-2, rtol=1e-2))
        assert is_skip or is_sb1, "training path produced neither x nor sb1(x)"

    print("KERNEL_OK")
</pallas_src>

<mosaic_0001>
module attributes {stable_mosaic.version = 11 : i64} {
  func.func @_linear_kernel(%arg0: i32, %arg1: i32, %arg2: i32, %arg3: memref<16x128xbf16, #tpu.memory_space<vmem>>, %arg4: memref<128x128xbf16, #tpu.memory_space<vmem>>, %arg5: memref<1x128xf32, #tpu.memory_space<vmem>>, %arg6: memref<16x128xf32, #tpu.memory_space<vmem>>, %arg7: memref<16x128xf32, #tpu.memory_space<vmem>>) attributes {dimension_semantics = [#tpu.dimension_semantics<parallel>, #tpu.dimension_semantics<parallel>, #tpu.dimension_semantics<arbitrary>], iteration_bounds = array<i64: 1, 1, 1>, scalar_prefetch = 0 : i64, scratch_operands = 1 : i64, tpu.core_type = #tpu.core_type<tc>, window_params = [{transform_indices = @transform_0, window_bounds = array<i64: 16, 128>}, {transform_indices = @transform_1, window_bounds = array<i64: 128, 128>}, {transform_indices = @transform_2, window_bounds = array<i64: 1, 128>}, {transform_indices = @transform_3, window_bounds = array<i64: 16, 128>}]} {
    %c0_i32 = arith.constant 0 : i32
    %0 = arith.cmpi eq, %arg2, %c0_i32 : i32
    %1 = arith.extui %0 : i1 to i32
    %c0_i32_0 = arith.constant 0 : i32
    %2 = arith.cmpi ne, %1, %c0_i32_0 : i32
    scf.if %2 {
      %c0_10 = arith.constant 0 : index
      %c0_11 = arith.constant 0 : index
      %12 = vector.load %arg5[%c0_10, %c0_11] : memref<1x128xf32, #tpu.memory_space<vmem>>, vector<1x128xf32>
      %13 = vector.shape_cast %12 : vector<1x128xf32> to vector<1x128xf32>
      %14 = vector.broadcast %13 : vector<1x128xf32> to vector<16x128xf32>
      %c0_12 = arith.constant 0 : index
      %c0_13 = arith.constant 0 : index
      %15 = vector.load %arg7[%c0_12, %c0_13] : memref<16x128xf32, #tpu.memory_space<vmem>>, vector<16x128xf32>
      tpu.vector_store %arg7[%c0_12, %c0_13], %14 {strides = array<i32>} : memref<16x128xf32, #tpu.memory_space<vmem>>, vector<16x128xf32>,
    } else {
    }
    %c0 = arith.constant 0 : index
    %c0_1 = arith.constant 0 : index
    %3 = vector.load %arg7[%c0, %c0_1] : memref<16x128xf32, #tpu.memory_space<vmem>>, vector<16x128xf32>
    %c0_2 = arith.constant 0 : index
    %c0_3 = arith.constant 0 : index
    %4 = vector.load %arg3[%c0_2, %c0_3] : memref<16x128xbf16, #tpu.memory_space<vmem>>, vector<16x128xbf16>
    %c0_4 = arith.constant 0 : index
    %c0_5 = arith.constant 0 : index
    %5 = vector.load %arg4[%c0_4, %c0_5] : memref<128x128xbf16, #tpu.memory_space<vmem>>, vector<128x128xbf16>
    %cst = arith.constant dense<0.000000e+00> : vector<16x128xf32>
    %6 = tpu.matmul %4, %5, %cst {dimension_numbers = #tpu.dot_dimension_numbers<[1], [0], [0], [1], [0, 0, 1, 1], [], []>} : vector<16x128xbf16>, vector<128x128xbf16>, vector<16x128xf32> -> vector<16x128xf32>
    %7 = arith.addf %3, %6 : vector<16x128xf32>
    %c0_6 = arith.constant 0 : index
    %c0_7 = arith.constant 0 : index
    %8 = vector.load %arg7[%c0_6, %c0_7] : memref<16x128xf32, #tpu.memory_space<vmem>>, vector<16x128xf32>
    tpu.vector_store %arg7[%c0_6, %c0_7], %7 {strides = array<i32>} : memref<16x128xf32, #tpu.memory_space<vmem>>, vector<16x128xf32>,
    %c0_i32_8 = arith.constant 0 : i32
    %9 = arith.cmpi eq, %arg2, %c0_i32_8 : i32
    %10 = arith.extui %9 : i1 to i32
    %c0_i32_9 = arith.constant 0 : i32
    %11 = arith.cmpi ne, %10, %c0_i32_9 : i32
    scf.if %11 {
      %c0_10 = arith.constant 0 : index
      %c0_11 = arith.constant 0 : index
      %12 = vector.load %arg7[%c0_10, %c0_11] : memref<16x128xf32, #tpu.memory_space<vmem>>, vector<16x128xf32>
      %c0_12 = arith.constant 0 : index
      %c0_13 = arith.constant 0 : index
      %13 = vector.load %arg6[%c0_12, %c0_13] : memref<16x128xf32, #tpu.memory_space<vmem>>, vector<16x128xf32>
      tpu.vector_store %arg6[%c0_12, %c0_13], %12 {strides = array<i32>} : memref<16x128xf32, #tpu.memory_space<vmem>>, vector<16x128xf32>,
    } else {
    }
    return
  }
  func.func @transform_0(%arg0: i32, %arg1: i32, %arg2: i32) -> (i32, i32) {
    %c0_i32 = arith.constant 0 : i32
    return %arg0, %arg2 : i32, i32
  }
  func.func @transform_1(%arg0: i32, %arg1: i32, %arg2: i32) -> (i32, i32) {
    %c0_i32 = arith.constant 0 : i32
    return %arg2, %arg1 : i32, i32
  }
  func.func @transform_2(%arg0: i32, %arg1: i32, %arg2: i32) -> (i32, i32) {
    %c0_i32 = arith.constant 0 : i32
    %c0_i32_0 = arith.constant 0 : i32
    return %c0_i32, %arg1 : i32, i32
  }
  func.func @transform_3(%arg0: i32, %arg1: i32, %arg2: i32) -> (i32, i32) {
    %c0_i32 = arith.constant 0 : i32
    return %arg0, %arg1 : i32, i32
  }
}

</mosaic_0001>

<llo_original>
// kernel: stochastic_skip_block.1
$region0: #{stochastic_skip_block.1}
  #allocation0 [shape = 'u32[]', space=smem, size = 0x4, offset = 0x4, fixed_abs, tag = 'smem constant byte address 0x4 - core index']
  #allocation1 [shape = 'u32[144,128]{1,0:T(1,128)}', space=vmem, size = 0x12000, scoped, tag = 'internal scratch']
  #allocation2 [shape = 'f32[16,128]{1,0:T(8,128)}', space=vmem, size = 0x2000, scoped, tag = 'scratch operand']
  %s0 = inlined_call_operand.vmem [shape: bf16[16,128], index: 0, kind: input, shape index: {}]
  %s1 = inlined_call_operand.vmem [shape: bf16[128,128], index: 1, kind: input, shape index: {}]
  %s2 = inlined_call_operand.vmem [shape: f32[1,128], index: 2, kind: input, shape index: {}]
  %s3 = inlined_call_operand.vmem [shape: f32[16,128], index: 3, kind: output, shape index: {}]
  %s4 = sld [smem:[#allocation0]]
  $region30: #{stochastic_skip_block.1} parent=0
    _
  %s6 = ssub.s32 1, %s4
  %s7 = scalar_select 0, %s6, %s4
  // Predicated region
  $region2: #{stochastic_skip_block.1} parent=0 // pred_check
    _
  $region3: #{stochastic_skip_block.1} parent=0 // pred_check_branch
    %9 = sbr.rel (0) target = $region5
  $region4: #{stochastic_skip_block.1} parent=0 // pred_region
    _
  $region5: #{stochastic_skip_block.1} parent=0 // pred_fallthru
    _
  // Predicated region
  $region6: #{stochastic_skip_block.1} parent=0 // pred_check
    _
  $region7: #{stochastic_skip_block.1} parent=0 // pred_check_branch
    %11 = sbr.rel (0) target = $region9
  $region8: #{stochastic_skip_block.1} parent=0 // pred_region
    _
  $region9: #{stochastic_skip_block.1} parent=0 // pred_fallthru
    _
  // Predicated region
  $region10: #{stochastic_skip_block.1} parent=0 // pred_check
    _
  $region11: #{stochastic_skip_block.1} parent=0 // pred_check_branch
    %13 = sbr.rel (0) target = $region13
  $region12: #{stochastic_skip_block.1} parent=0 // pred_region
    _
  $region13: #{stochastic_skip_block.1} parent=0 // pred_fallthru
    _
  %p15 = scmp.eq.s32.totalorder 0, 0
  // Predicated region
  $region14: #{stochastic_skip_block.1} parent=0 // pred_check
    %p16 = pneg %p15
  $region15: #{stochastic_skip_block.1} parent=0 // pred_check_branch
    %18 = sbr.rel (%p16) target = $region17
  $region16: #{stochastic_skip_block.1} parent=0 // pred_region
    %v19 = vld [vmem:[%s2] sm:$0x1]
    %v21 = vlaneseq
    %v22 = vshrl.u32 %v21, 7
    %v23 = vsub.s32 0, %v22
    %v24 = vrot.slane %v19, %v23
    %26 = vst [vmem:[#allocation2] sm:$0xff] %v24
    %27 = vst [vmem:[#allocation2 + $0x8] sm:$0xff] %v24
  $region17: #{stochastic_skip_block.1} parent=0 // pred_fallthru
    _
  %v28 = vld [vmem:[#allocation2] sm:$0xff]
  %v29 = vld [vmem:[#allocation2 + $0x8] sm:$0xff]
  %v30 = vld [vmem:[%s0] sm:$0xf]
  %v31 = vld [vmem:[%s0 + $0x4] sm:$0xf]
  %v32 = vld [vmem:[%s1] sm:$0xf]
  %v33 = vld [vmem:[%s1 + $0x4] sm:$0xf]
  %v34 = vld [vmem:[%s1 + $0x8] sm:$0xf]
  %v35 = vld [vmem:[%s1 + $0xc] sm:$0xf]
  %v36 = vld [vmem:[%s1 + $0x10] sm:$0xf]
  %v37 = vld [vmem:[%s1 + $0x14] sm:$0xf]
  %v38 = vld [vmem:[%s1 + $0x18] sm:$0xf]
  %v39 = vld [vmem:[%s1 + $0x1c] sm:$0xf]
  %v40 = vld [vmem:[%s1 + $0x20] sm:$0xf]
  %v41 = vld [vmem:[%s1 + $0x24] sm:$0xf]
  %v42 = vld [vmem:[%s1 + $0x28] sm:$0xf]
  %v43 = vld [vmem:[%s1 + $0x2c] sm:$0xf]
  %v44 = vld [vmem:[%s1 + $0x30] sm:$0xf]
  %v45 = vld [vmem:[%s1 + $0x34] sm:$0xf]
  %v46 = vld [vmem:[%s1 + $0x38] sm:$0xf]
  %v47 = vld [vmem:[%s1 + $0x3c] sm:$0xf]
  %v50 = vunpack.c.l.b16 %v30
  %v51 = vunpack.c.l.b16 %v31
  %v52 = vpack.c.b16 %v51, %v50
  %v70 = vunpack.c.l.b16 %v32
  %v71 = vunpack.c.l.b16 %v33
  %v72 = vunpack.c.l.b16 %v34
  %v73 = vunpack.c.l.b16 %v35
  %v74 = vunpack.c.l.b16 %v36
  %v75 = vunpack.c.l.b16 %v37
  %v76 = vunpack.c.l.b16 %v38
  %v77 = vunpack.c.l.b16 %v39
  %v78 = vunpack.c.l.b16 %v40
  %v79 = vunpack.c.l.b16 %v41
  %v80 = vunpack.c.l.b16 %v42
  %v81 = vunpack.c.l.b16 %v43
  %v82 = vunpack.c.l.b16 %v44
  %v83 = vunpack.c.l.b16 %v45
  %v84 = vunpack.c.l.b16 %v46
  %v85 = vunpack.c.l.b16 %v47
  %v86 = vpack.c.b16 %v71, %v70
  %v87 = vpack.c.b16 %v73, %v72
  %v88 = vpack.c.b16 %v75, %v74
  %v89 = vpack.c.b16 %v77, %v76
  %v90 = vpack.c.b16 %v79, %v78
  %v91 = vpack.c.b16 %v81, %v80
  %v92 = vpack.c.b16 %v83, %v82
  %v93 = vpack.c.b16 %v85, %v84
  %102 = vmatprep.subr.bf16.mxu0 0
  %103 = vmatpush1.bf16.msra.mxu0 %v93
  %104 = vmatprep.subr.bf16.mxu0 0
  %105 = vmatpush1.bf16.msra.mxu0 %v92
  %106 = vmatprep.subr.bf16.mxu0 0
  %107 = vmatpush1.bf16.msra.mxu0 %v91
  %108 = vmatprep.subr.bf16.mxu0 0
  %109 = vmatpush1.bf16.msra.mxu0 %v90
  %110 = vmatprep.subr.bf16.mxu0 0
  %111 = vmatpush1.bf16.msra.mxu0 %v89
  %112 = vmatprep.subr.bf16.mxu0 0
  %113 = vmatpush1.bf16.msra.mxu0 %v88
  %114 = vmatprep.subr.bf16.mxu0 0
  %115 = vmatpush1.bf16.msra.mxu0 %v87
  %116 = vmatprep.subr.bf16.mxu0 0
  %117 = vmatpush1.bf16.msra.mxu0 %v86
  %118 = vmatprep.subr.bf16.mxu0 0
  %119 = vmatpush2.bf16.msra.mxu0 0
  %120 = vmatprep.subr.bf16.mxu0 0
  %121 = vmatpush2.bf16.msra.mxu0 0
  %122 = vmatprep.subr.bf16.mxu0 0
  %123 = vmatpush2.bf16.msra.mxu0 0
  %124 = vmatprep.subr.bf16.mxu0 0
  %125 = vmatpush2.bf16.msra.mxu0 0
  %126 = vmatprep.subr.bf16.mxu0 0
  %127 = vmatpush2.bf16.msra.mxu0 0
  %128 = vmatprep.subr.bf16.mxu0 0
  %129 = vmatpush2.bf16.msra.mxu0 0
  %130 = vmatprep.subr.bf16.mxu0 0
  %131 = vmatpush2.bf16.msra.mxu0 0
  %132 = vmatprep.subr.bf16.mxu0 0
  %133 = vmatpush2.bf16.msra.mxu0 0
  %134 = vmatprep.mubr.bf16.mxu0 0
  %135 = vmatmul.mubr.bf16.gmra.mxu0 %v52
  %v136 = vpop.f32.mrf.mxu0
  %v137 = vadd.f32 0.0, %v136
  %v138 = vpop.f32.mrf.mxu0
  %v139 = vpop.f32.mrf.mxu0
  %v140 = vadd.f32 0.0, %v139
  %v141 = vpop.f32.mrf.mxu0
  %142 = vdwg.mxu0
  %v143 = vadd.f32 %v28, %v137
  %v144 = vadd.f32 %v29, %v140
  %145 = vst [vmem:[#allocation2] sm:$0xff] %v143
  %146 = vst [vmem:[#allocation2 + $0x8] sm:$0xff] %v144
  // Predicated region
  $region18: #{stochastic_skip_block.1} parent=0 // pred_check
    %p147 = pneg %p15
  $region19: #{stochastic_skip_block.1} parent=0 // pred_check_branch
    %149 = sbr.rel (%p147) target = $region21
  $region20: #{stochastic_skip_block.1} parent=0 // pred_region
    %v150 = vld [vmem:[#allocation2] sm:$0xff]
    %v151 = vld [vmem:[#allocation2 + $0x8] sm:$0xff]
    %152 = vst [vmem:[%s3] sm:$0xff] %v150
    %153 = vst [vmem:[%s3 + $0x8] sm:$0xff] %v151
  $region21: #{stochastic_skip_block.1} parent=0 // pred_fallthru
    _
  // Predicated region
  $region22: #{stochastic_skip_block.1} parent=0 // pred_check
    _
  $region23: #{stochastic_skip_block.1} parent=0 // pred_check_branch
    %155 = sbr.rel (0) target = $region25
  $region24: #{stochastic_skip_block.1} parent=0 // pred_region
    _
  $region25: #{stochastic_skip_block.1} parent=0 // pred_fallthru
    _
  // Predicated region
  $region26: #{stochastic_skip_block.1} parent=0 // pred_check
    _
  $region27: #{stochastic_skip_block.1} parent=0 // pred_check_branch
    %157 = sbr.rel (0) target = $region29
  $region28: #{stochastic_skip_block.1} parent=0 // pred_region
    _
  $region29: #{stochastic_skip_block.1} parent=0 // pred_fallthru
    _

</llo_original>
